<compile_context>
chip_gen: v7x
topology: tpu7x:2x2x1
jax: 0.10.0
libtpu: 0.0.40
codegen_flags: <defaults>
</compile_context>

<pallas_src>
from functools import partial

import jax
import jax.numpy as jnp
from jax.experimental import pallas as pl
from jax.experimental.pallas import tpu as pltpu


def _attn_kernel(hidden_ref, wqkv_ref, cos_ref, sin_ref, kmask_ref, out_ref,
                 *, num_heads, head_dim, matmul_dtype):
    """One batch element per grid step.

    hidden_ref : [1, S, D]   (D = num_heads * head_dim)
    wqkv_ref   : [D, 3D]     fused (Wq | Wk | Wv), pre-transposed to [in, out]
    cos_ref    : [S, Dh]
    sin_ref    : [S, Dh]     sign-folded: concat(-sin[:, :half], sin[:, half:])
    kmask_ref  : [1, 1, S]   additive key mask (0 / -1e9)
    out_ref    : [1, S, D]
    """
    D = num_heads * head_dim
    half = head_dim // 2
    scale = head_dim ** (-0.5)

    h = hidden_ref[0]                                               # [S, D]

    # ---- fused QKV projection: one wide MXU matmul (N = 3D), f32 accumulate.
    qkv = jnp.dot(h.astype(matmul_dtype), wqkv_ref[...].astype(matmul_dtype),
                  preferred_element_type=jnp.float32)               # [S, 3D]
    q = qkv[:, :D]
    k = qkv[:, D:2 * D]
    v = qkv[:, 2 * D:]

    # ---- head-batched layout [H, S, Dh]; one stack per tensor, no per-head matmuls.
    def to_heads(x):
        return jnp.stack(
            [x[:, hd * head_dim:(hd + 1) * head_dim] for hd in range(num_heads)],
            axis=0)                                                 # [H, S, Dh]

    qh = to_heads(q) * scale          # scale before rotary, as in the torch module
    kh = to_heads(k)
    vh = to_heads(v)

    # ---- rotary for all heads at once (f32).  Sign of rotate_half is folded
    #      into sin_ref, so only a half-swap + two FMAs are needed.
    cos = cos_ref[...][None]                                        # [1, S, Dh]
    sin_signed = sin_ref[...][None]                                 # [1, S, Dh]

    def half_swap(x):
        return jnp.concatenate([x[..., half:], x[..., :half]], axis=-1)

    qh = qh * cos + half_swap(qh) * sin_signed
    kh = kh * cos + half_swap(kh) * sin_signed

    # ---- scores: head-batched, contract the last dims (no explicit k transpose).
    scores = jnp.einsum("hqd,hkd->hqk",
                        qh.astype(matmul_dtype), kh.astype(matmul_dtype),
                        preferred_element_type=jnp.float32)         # [H, S, S] f32
    scores = scores + kmask_ref[0][None]                            # [1,1,S] broadcast

    # ---- softmax in f32; reciprocal on the EUP slot.
    m = jnp.max(scores, axis=-1, keepdims=True)
    p = jnp.exp(scores - m)
    denom = jnp.sum(p, axis=-1, keepdims=True)
    probs = p * pl.reciprocal(denom, approx=True)
    # dropout is identity in eval mode; head_mask is None.

    # ---- context: head-batched matmul, f32 accumulate.
    ctx = jnp.einsum("hqk,hkd->hqd",
                     probs.astype(matmul_dtype), vh.astype(matmul_dtype),
                     preferred_element_type=jnp.float32)            # [H, S, Dh]

    # ---- single full-width store; head order matches permute(0,2,1,3).view(...).
    out = jnp.concatenate([ctx[hd] for hd in range(num_heads)], axis=-1)  # [S, D]
    out_ref[0] = out.astype(out_ref.dtype)


def prolm_self_attention(hidden, wq, wk, wv, cos, sin, key_mask,
                         *, num_heads, head_dim, matmul_dtype=jnp.bfloat16):
    """hidden: [B,S,D]; wq/wk/wv: [D,D] pre-transposed ([in,out]);
    cos/sin: [S,Dh]; key_mask: [B,S] additive (0 / -1e9)."""
    B, S, D = hidden.shape
    assert D == num_heads * head_dim

    # Fuse projection weights: one [D, 3D] matmul instead of three [D, D].
    wqkv = jnp.concatenate([wq, wk, wv], axis=1)

    # Fold rotate_half's negation into the sin table (kernel only half-swaps).
    half = head_dim // 2
    sin_signed = jnp.concatenate([-sin[:, :half], sin[:, half:]], axis=-1)

    if matmul_dtype != jnp.float32:
        hidden_in = hidden.astype(matmul_dtype)   # halves HBM/VMEM bytes
        wqkv = wqkv.astype(matmul_dtype)
    else:
        hidden_in = hidden

    kmask = key_mask[:, None, :].astype(jnp.float32)   # [B, 1, S]

    kernel = partial(_attn_kernel, num_heads=num_heads, head_dim=head_dim,
                     matmul_dtype=matmul_dtype)
    return pl.pallas_call(
        kernel,
        out_shape=jax.ShapeDtypeStruct((B, S, D), jnp.float32),
        grid_spec=pltpu.PrefetchScalarGridSpec(
            num_scalar_prefetch=0,
            grid=(B,),
            in_specs=[
                pl.BlockSpec((1, S, D), lambda b: (b, 0, 0)),         # hidden
                pl.BlockSpec((D, 3 * D), lambda b: (0, 0)),           # fused W_qkv
                pl.BlockSpec((S, head_dim), lambda b: (0, 0)),        # cos
                pl.BlockSpec((S, head_dim), lambda b: (0, 0)),        # sin (sign-folded)
                pl.BlockSpec((1, 1, S), lambda b: (b, 0, 0)),         # additive key mask
            ],
            out_specs=pl.BlockSpec((1, S, D), lambda b: (b, 0, 0)),
        ),
        compiler_params=pltpu.CompilerParams(
            dimension_semantics=("parallel",)),
        # NOTE: for larger S/D set vmem_limit_bytes explicitly; the demo tiles
        # are far below the 16/32 MiB scoped defaults.
    )(hidden_in, wqkv, cos, sin_signed, kmask)


# ---------------- pure-JAX reference (mirrors the torch forward) -------------

def _rotate_half(x):
    h = x.shape[-1] // 2
    return jnp.concatenate([-x[..., h:], x[..., :h]], axis=-1)


def reference(hidden, wq, wk, wv, cos, sin, key_mask, *, num_heads, head_dim):
    B, S, D = hidden.shape
    q = hidden @ wq
    k = hidden @ wk
    v = hidden @ wv

    def t4s(x):  # transpose_for_scores
        return x.reshape(B, S, num_heads, head_dim).transpose(0, 2, 1, 3)

    q, k, v = t4s(q), t4s(k), t4s(v)
    q = q * head_dim ** (-0.5)
    c = cos[None, None]
    s = sin[None, None]
    q = q * c + _rotate_half(q) * s
    k = k * c + _rotate_half(k) * s
    scores = jnp.einsum("bhqd,bhkd->bhqk", q, k) + key_mask[:, None, None, :]
    probs = jax.nn.softmax(scores, axis=-1)
    ctx = jnp.einsum("bhqk,bhkd->bhqd", probs, v)
    return ctx.transpose(0, 2, 1, 3).reshape(B, S, D)


if __name__ == "__main__":
    # config: hidden_size=32, num_attention_heads=4, seq=8, batch=2,
    # position_embedding_type='rotary', flash_attention=False, eval mode.
    B, S, D = 2, 8, 32
    H = 4
    Dh = D // H

    key = jax.random.PRNGKey(0)
    k_h, k_q, k_k, k_v = jax.random.split(key, 4)
    hidden = jax.random.normal(k_h, (B, S, D), dtype=jnp.float32)
    # nn.Linear(D, D, bias=False) weights, stored pre-transposed ([in, out]).
    wq = jax.random.normal(k_q, (D, D), dtype=jnp.float32) * 0.05
    wk = jax.random.normal(k_k, (D, D), dtype=jnp.float32) * 0.05
    wv = jax.random.normal(k_v, (D, D), dtype=jnp.float32) * 0.05

    # RotaryEmbedding tables.
    inv_freq = 1.0 / (10000.0 ** (jnp.arange(0, Dh, 2, dtype=jnp.float32) / Dh))
    t = jnp.arange(S, dtype=jnp.float32)
    freqs = jnp.outer(t, inv_freq)                      # [S, Dh/2]
    emb = jnp.concatenate([freqs, freqs], axis=-1)      # [S, Dh]
    cos = jnp.cos(emb)
    sin = jnp.sin(emb)

    # Additive key mask: mask out the last 2 keys of batch 1.
    key_mask = jnp.zeros((B, S), dtype=jnp.float32)
    key_mask = key_mask.at[1, -2:].set(-1e9)

    ref = reference(hidden, wq, wk, wv, cos, sin, key_mask,
                    num_heads=H, head_dim=Dh)

    # f32-MXU path: tight check (only the approx EUP reciprocal differs).
    out_f32 = prolm_self_attention(hidden, wq, wk, wv, cos, sin, key_mask,
                                   num_heads=H, head_dim=Dh,
                                   matmul_dtype=jnp.float32)
    out_f32 = jax.block_until_ready(out_f32)
    assert out_f32.shape == (B, S, D)
    assert jnp.allclose(out_f32, ref, atol=2e-3, rtol=2e-3), "f32 path mismatch"

    # bf16-MXU path (recommended perf config): looser tolerance for bf16 rounding.
    out_bf16 = prolm_self_attention(hidden, wq, wk, wv, cos, sin, key_mask,
                                    num_heads=H, head_dim=Dh,
                                    matmul_dtype=jnp.bfloat16)
    out_bf16 = jax.block_until_ready(out_bf16)
    assert out_bf16.shape == (B, S, D)
    assert jnp.allclose(out_bf16, ref, atol=3e-2, rtol=3e-2), "bf16 path mismatch"

    print("KERNEL_OK")
</pallas_src>

<mosaic_0001>
module attributes {stable_mosaic.version = 11 : i64} {
  func.func @_attn_kernel(%arg0: i32, %arg1: memref<1x8x32xf32, #tpu.memory_space<vmem>>, %arg2: memref<32x96xf32, #tpu.memory_space<vmem>>, %arg3: memref<8x8xf32, #tpu.memory_space<vmem>>, %arg4: memref<8x8xf32, #tpu.memory_space<vmem>>, %arg5: memref<1x1x8xf32, #tpu.memory_space<vmem>>, %arg6: memref<1x8x32xf32, #tpu.memory_space<vmem>>) attributes {dimension_semantics = [#tpu.dimension_semantics<parallel>], iteration_bounds = array<i64: 2>, scalar_prefetch = 0 : i64, scratch_operands = 0 : i64, tpu.core_type = #tpu.core_type<tc>, window_params = [{transform_indices = @transform_0, window_bounds = array<i64: 1, 8, 32>}, {pipeline_mode = #tpu.pipeline_mode<synchronous>, transform_indices = @transform_1, window_bounds = array<i64: 32, 96>}, {pipeline_mode = #tpu.pipeline_mode<synchronous>, transform_indices = @transform_2, window_bounds = array<i64: 8, 8>}, {pipeline_mode = #tpu.pipeline_mode<synchronous>, transform_indices = @transform_3, window_bounds = array<i64: 8, 8>}, {transform_indices = @transform_4, window_bounds = array<i64: 1, 1, 8>}, {transform_indices = @transform_5, window_bounds = array<i64: 1, 8, 32>}]} {
    %c0 = arith.constant 0 : index
    %c0_0 = arith.constant 0 : index
    %c0_1 = arith.constant 0 : index
    %0 = vector.load %arg1[%c0, %c0_0, %c0_1] : memref<1x8x32xf32, #tpu.memory_space<vmem>>, vector<1x8x32xf32>
    %1 = vector.shape_cast %0 : vector<1x8x32xf32> to vector<8x32xf32>
    %c0_2 = arith.constant 0 : index
    %c0_3 = arith.constant 0 : index
    %2 = vector.load %arg2[%c0_2, %c0_3] : memref<32x96xf32, #tpu.memory_space<vmem>>, vector<32x96xf32>
    %cst = arith.constant dense<0.000000e+00> : vector<8x96xf32>
    %3 = tpu.matmul %1, %2, %cst {dimension_numbers = #tpu.dot_dimension_numbers<[1], [0], [0], [1], [0, 0, 1, 1], [], []>} : vector<8x32xf32>, vector<32x96xf32>, vector<8x96xf32> -> vector<8x96xf32>
    %4 = vector.extract_strided_slice %3 {offsets = [0, 0], sizes = [8, 32], strides = [1, 1]} : vector<8x96xf32> to vector<8x32xf32>
    %5 = vector.extract_strided_slice %3 {offsets = [0, 32], sizes = [8, 32], strides = [1, 1]} : vector<8x96xf32> to vector<8x32xf32>
    %6 = vector.extract_strided_slice %3 {offsets = [0, 64], sizes = [8, 32], strides = [1, 1]} : vector<8x96xf32> to vector<8x32xf32>
    %7 = vector.extract_strided_slice %4 {offsets = [0, 0], sizes = [8, 8], strides = [1, 1]} : vector<8x32xf32> to vector<8x8xf32>
    %8 = vector.extract_strided_slice %4 {offsets = [0, 8], sizes = [8, 8], strides = [1, 1]} : vector<8x32xf32> to vector<8x8xf32>
    %9 = vector.extract_strided_slice %4 {offsets = [0, 16], sizes = [8, 8], strides = [1, 1]} : vector<8x32xf32> to vector<8x8xf32>
    %10 = vector.extract_strided_slice %4 {offsets = [0, 24], sizes = [8, 8], strides = [1, 1]} : vector<8x32xf32> to vector<8x8xf32>
    %11 = vector.shape_cast %7 : vector<8x8xf32> to vector<1x8x8xf32>
    %12 = vector.shape_cast %8 : vector<8x8xf32> to vector<1x8x8xf32>
    %13 = vector.shape_cast %9 : vector<8x8xf32> to vector<1x8x8xf32>
    %14 = vector.shape_cast %10 : vector<8x8xf32> to vector<1x8x8xf32>
    %15 = tpu.concatenate %11, %12, %13, %14 in 0 : vector<1x8x8xf32>, vector<1x8x8xf32>, vector<1x8x8xf32>, vector<1x8x8xf32> -> vector<4x8x8xf32>
    %cst_4 = arith.constant 0.353553385 : f32
    %16 = vector.broadcast %cst_4 : f32 to vector<4x8x8xf32>
    %17 = arith.mulf %15, %16 : vector<4x8x8xf32>
    %18 = vector.extract_strided_slice %5 {offsets = [0, 0], sizes = [8, 8], strides = [1, 1]} : vector<8x32xf32> to vector<8x8xf32>
    %19 = vector.extract_strided_slice %5 {offsets = [0, 8], sizes = [8, 8], strides = [1, 1]} : vector<8x32xf32> to vector<8x8xf32>
    %20 = vector.extract_strided_slice %5 {offsets = [0, 16], sizes = [8, 8], strides = [1, 1]} : vector<8x32xf32> to vector<8x8xf32>
    %21 = vector.extract_strided_slice %5 {offsets = [0, 24], sizes = [8, 8], strides = [1, 1]} : vector<8x32xf32> to vector<8x8xf32>
    %22 = vector.shape_cast %18 : vector<8x8xf32> to vector<1x8x8xf32>
    %23 = vector.shape_cast %19 : vector<8x8xf32> to vector<1x8x8xf32>
    %24 = vector.shape_cast %20 : vector<8x8xf32> to vector<1x8x8xf32>
    %25 = vector.shape_cast %21 : vector<8x8xf32> to vector<1x8x8xf32>
    %26 = tpu.concatenate %22, %23, %24, %25 in 0 : vector<1x8x8xf32>, vector<1x8x8xf32>, vector<1x8x8xf32>, vector<1x8x8xf32> -> vector<4x8x8xf32>
    %27 = vector.extract_strided_slice %6 {offsets = [0, 0], sizes = [8, 8], strides = [1, 1]} : vector<8x32xf32> to vector<8x8xf32>
    %28 = vector.extract_strided_slice %6 {offsets = [0, 8], sizes = [8, 8], strides = [1, 1]} : vector<8x32xf32> to vector<8x8xf32>
    %29 = vector.extract_strided_slice %6 {offsets = [0, 16], sizes = [8, 8], strides = [1, 1]} : vector<8x32xf32> to vector<8x8xf32>
    %30 = vector.extract_strided_slice %6 {offsets = [0, 24], sizes = [8, 8], strides = [1, 1]} : vector<8x32xf32> to vector<8x8xf32>
    %31 = vector.shape_cast %27 : vector<8x8xf32> to vector<1x8x8xf32>
    %32 = vector.shape_cast %28 : vector<8x8xf32> to vector<1x8x8xf32>
    %33 = vector.shape_cast %29 : vector<8x8xf32> to vector<1x8x8xf32>
    %34 = vector.shape_cast %30 : vector<8x8xf32> to vector<1x8x8xf32>
    %35 = tpu.concatenate %31, %32, %33, %34 in 0 : vector<1x8x8xf32>, vector<1x8x8xf32>, vector<1x8x8xf32>, vector<1x8x8xf32> -> vector<4x8x8xf32>
    %c0_5 = arith.constant 0 : index
    %c0_6 = arith.constant 0 : index
    %36 = vector.load %arg3[%c0_5, %c0_6] : memref<8x8xf32, #tpu.memory_space<vmem>>, vector<8x8xf32>
    %37 = vector.shape_cast %36 : vector<8x8xf32> to vector<1x8x8xf32>
    %c0_7 = arith.constant 0 : index
    %c0_8 = arith.constant 0 : index
    %38 = vector.load %arg4[%c0_7, %c0_8] : memref<8x8xf32, #tpu.memory_space<vmem>>, vector<8x8xf32>
    %39 = vector.shape_cast %38 : vector<8x8xf32> to vector<1x8x8xf32>
    %40 = vector.broadcast %37 : vector<1x8x8xf32> to vector<4x8x8xf32>
    %41 = arith.mulf %17, %40 : vector<4x8x8xf32>
    %42 = vector.extract_strided_slice %17 {offsets = [0, 0, 4], sizes = [4, 8, 4], strides = [1, 1, 1]} : vector<4x8x8xf32> to vector<4x8x4xf32>
    %43 = vector.extract_strided_slice %17 {offsets = [0, 0, 0], sizes = [4, 8, 4], strides = [1, 1, 1]} : vector<4x8x8xf32> to vector<4x8x4xf32>
    %44 = tpu.concatenate %42, %43 in 2 : vector<4x8x4xf32>, vector<4x8x4xf32> -> vector<4x8x8xf32>
    %45 = vector.broadcast %39 : vector<1x8x8xf32> to vector<4x8x8xf32>
    %46 = arith.mulf %44, %45 : vector<4x8x8xf32>
    %47 = arith.addf %41, %46 : vector<4x8x8xf32>
    %48 = vector.broadcast %37 : vector<1x8x8xf32> to vector<4x8x8xf32>
    %49 = arith.mulf %26, %48 : vector<4x8x8xf32>
    %50 = vector.extract_strided_slice %26 {offsets = [0, 0, 4], sizes = [4, 8, 4], strides = [1, 1, 1]} : vector<4x8x8xf32> to vector<4x8x4xf32>
    %51 = vector.extract_strided_slice %26 {offsets = [0, 0, 0], sizes = [4, 8, 4], strides = [1, 1, 1]} : vector<4x8x8xf32> to vector<4x8x4xf32>
    %52 = tpu.concatenate %50, %51 in 2 : vector<4x8x4xf32>, vector<4x8x4xf32> -> vector<4x8x8xf32>
    %53 = vector.broadcast %39 : vector<1x8x8xf32> to vector<4x8x8xf32>
    %54 = arith.mulf %52, %53 : vector<4x8x8xf32>
    %55 = arith.addf %49, %54 : vector<4x8x8xf32>
    "tpu.trace_start"() <{level = 10 : i32, message = "hqd,hkd->hqk"}> : () -> ()
    %cst_9 = arith.constant dense<0.000000e+00> : vector<4x8x8xf32>
    %56 = tpu.matmul %47, %55, %cst_9 {dimension_numbers = #tpu.dot_dimension_numbers<[2], [2], [1], [1], [0, 0, 0, 1, 1, 1], [0], [0]>} : vector<4x8x8xf32>, vector<4x8x8xf32>, vector<4x8x8xf32> -> vector<4x8x8xf32>
    "tpu.trace_stop"() : () -> ()
    %c0_10 = arith.constant 0 : index
    %c0_11 = arith.constant 0 : index
    %c0_12 = arith.constant 0 : index
    %57 = vector.load %arg5[%c0_10, %c0_11, %c0_12] : memref<1x1x8xf32, #tpu.memory_space<vmem>>, vector<1x1x8xf32>
    %58 = vector.shape_cast %57 : vector<1x1x8xf32> to vector<1x8xf32>
    %59 = vector.shape_cast %58 : vector<1x8xf32> to vector<1x1x8xf32>
    %60 = vector.broadcast %59 : vector<1x1x8xf32> to vector<4x8x8xf32>
    %61 = arith.addf %56, %60 : vector<4x8x8xf32>
    %cst_13 = arith.constant dense<0xFF800000> : vector<4x8xf32>
    %62 = vector.multi_reduction <maximumf>, %61, %cst_13 [2] : vector<4x8x8xf32> to vector<4x8xf32>
    %63 = vector.shape_cast %62 : vector<4x8xf32> to vector<4x8x1xf32>
    %64 = vector.broadcast %63 : vector<4x8x1xf32> to vector<4x8x8xf32>
    %65 = arith.subf %61, %64 : vector<4x8x8xf32>
    %66 = math.exp %65 : vector<4x8x8xf32>
    %cst_14 = arith.constant dense<0.000000e+00> : vector<4x8xf32>
    %67 = vector.multi_reduction <add>, %66, %cst_14 [2] : vector<4x8x8xf32> to vector<4x8xf32>
    %68 = vector.shape_cast %67 : vector<4x8xf32> to vector<4x8x1xf32>
    %69 = tpu.reciprocal %68 {approx = true} : vector<4x8x1xf32> -> vector<4x8x1xf32>
    %70 = vector.broadcast %69 : vector<4x8x1xf32> to vector<4x8x8xf32>
    %71 = arith.mulf %66, %70 : vector<4x8x8xf32>
    "tpu.trace_start"() <{level = 10 : i32, message = "hqk,hkd->hqd"}> : () -> ()
    %cst_15 = arith.constant dense<0.000000e+00> : vector<4x8x8xf32>
    %72 = tpu.matmul %71, %35, %cst_15 {dimension_numbers = #tpu.dot_dimension_numbers<[2], [1], [1], [2], [0, 0, 0, 1, 1, 2], [0], [0]>} : vector<4x8x8xf32>, vector<4x8x8xf32>, vector<4x8x8xf32> -> vector<4x8x8xf32>
    "tpu.trace_stop"() : () -> ()
    %73 = vector.extract_strided_slice %72 {offsets = [0, 0, 0], sizes = [1, 8, 8], strides = [1, 1, 1]} : vector<4x8x8xf32> to vector<1x8x8xf32>
    %74 = vector.shape_cast %73 : vector<1x8x8xf32> to vector<8x8xf32>
    %75 = vector.extract_strided_slice %72 {offsets = [1, 0, 0], sizes = [1, 8, 8], strides = [1, 1, 1]} : vector<4x8x8xf32> to vector<1x8x8xf32>
    %76 = vector.shape_cast %75 : vector<1x8x8xf32> to vector<8x8xf32>
    %77 = vector.extract_strided_slice %72 {offsets = [2, 0, 0], sizes = [1, 8, 8], strides = [1, 1, 1]} : vector<4x8x8xf32> to vector<1x8x8xf32>
    %78 = vector.shape_cast %77 : vector<1x8x8xf32> to vector<8x8xf32>
    %79 = vector.extract_strided_slice %72 {offsets = [3, 0, 0], sizes = [1, 8, 8], strides = [1, 1, 1]} : vector<4x8x8xf32> to vector<1x8x8xf32>
    %80 = vector.shape_cast %79 : vector<1x8x8xf32> to vector<8x8xf32>
    %81 = tpu.concatenate %74, %76, %78, %80 in 1 : vector<8x8xf32>, vector<8x8xf32>, vector<8x8xf32>, vector<8x8xf32> -> vector<8x32xf32>
    %c0_16 = arith.constant 0 : index
    %c0_17 = arith.constant 0 : index
    %c0_18 = arith.constant 0 : index
    %82 = vector.load %arg6[%c0_16, %c0_17, %c0_18] : memref<1x8x32xf32, #tpu.memory_space<vmem>>, vector<1x8x32xf32>
    %83 = vector.shape_cast %82 : vector<1x8x32xf32> to vector<8x32xf32>
    %84 = vector.shape_cast %81 : vector<8x32xf32> to vector<1x8x32xf32>
    tpu.vector_store %arg6[%c0_16, %c0_17, %c0_18], %84 {strides = array<i32>} : memref<1x8x32xf32, #tpu.memory_space<vmem>>, vector<1x8x32xf32>,
    return
  }
  func.func @transform_0(%arg0: i32) -> (i32, i32, i32) {
    %c0_i32 = arith.constant 0 : i32
    %c0_i32_0 = arith.constant 0 : i32
    %c0_i32_1 = arith.constant 0 : i32
    return %arg0, %c0_i32, %c0_i32_0 : i32, i32, i32
  }
  func.func @transform_1(%arg0: i32) -> (i32, i32) {
    %c0_i32 = arith.constant 0 : i32
    %c0_i32_0 = arith.constant 0 : i32
    %c0_i32_1 = arith.constant 0 : i32
    return %c0_i32, %c0_i32_0 : i32, i32
  }
  func.func @transform_2(%arg0: i32) -> (i32, i32) {
    %c0_i32 = arith.constant 0 : i32
    %c0_i32_0 = arith.constant 0 : i32
    %c0_i32_1 = arith.constant 0 : i32
    return %c0_i32, %c0_i32_0 : i32, i32
  }
  func.func @transform_3(%arg0: i32) -> (i32, i32) {
    %c0_i32 = arith.constant 0 : i32
    %c0_i32_0 = arith.constant 0 : i32
    %c0_i32_1 = arith.constant 0 : i32
    return %c0_i32, %c0_i32_0 : i32, i32
  }
  func.func @transform_4(%arg0: i32) -> (i32, i32, i32) {
    %c0_i32 = arith.constant 0 : i32
    %c0_i32_0 = arith.constant 0 : i32
    %c0_i32_1 = arith.constant 0 : i32
    return %arg0, %c0_i32, %c0_i32_0 : i32, i32, i32
  }
  func.func @transform_5(%arg0: i32) -> (i32, i32, i32) {
    %c0_i32 = arith.constant 0 : i32
    %c0_i32_0 = arith.constant 0 : i32
    %c0_i32_1 = arith.constant 0 : i32
    return %arg0, %c0_i32, %c0_i32_0 : i32, i32, i32
  }
}

</mosaic_0001>

<llo_original>
// kernel: tpu_custom_call.1
$region0: #{tpu_custom_call.1}
  #allocation0 [shape = 'u32[]', space=smem, size = 0x4, offset = 0x4, fixed_abs, tag = 'smem constant byte address 0x4 - core index']
  #allocation1 [shape = 'u32[144,128]{1,0:T(1,128)}', space=vmem, size = 0x12000, scoped, tag = 'internal scratch']
  %s0 = inlined_call_operand.hbm [shape: f32[2,8,32], index: 0, kind: input, shape index: {}]
  %s1 = inlined_call_operand.hbm [shape: f32[32,96], index: 1, kind: input, shape index: {}]
  %s2 = inlined_call_operand.hbm [shape: f32[8,8], index: 2, kind: input, shape index: {}]
  %s3 = inlined_call_operand.vmem [shape: f32[8,8], index: 3, kind: input, shape index: {}]
  %s4 = inlined_call_operand.vmem [shape: f32[2,1,8], index: 4, kind: input, shape index: {}]
  %s5 = inlined_call_operand.hbm [shape: f32[2,8,32], index: 5, kind: output, shape index: {}]
  %s6 = sld [smem:[#allocation0]]
  $region65: #{tpu_custom_call.1} parent=0
    _
  %s8 = ssub.s32 1, %s6
  %s9 = scalar_select 0, %s8, %s6
  $region1: #{tpu_custom_call.1} parent=0
    #allocation2 [shape = 'u8[8192]{0}', space=vmem, size = 0x2000, scoped, tag = 'input window, operand 0']
    #allocation3 [shape = 's32[2]{0}', space=sflag, size = 0x8, scoped, tag = 'scoped memory for tpu_custom_call.1']
    #allocation4 [shape = 's32[2]{0}', space=sflag, size = 0x8, scoped, tag = 'scoped memory for tpu_custom_call.1']
    #allocation5 [shape = 'u8[16384]{0}', space=vmem, size = 0x4000, scoped, tag = 'input window, operand 1, single buffered']
    #allocation6 [shape = 's32[1]{0}', space=sflag, size = 0x4, scoped, tag = 'scoped memory for tpu_custom_call.1']
    #allocation7 [shape = 'u8[4096]{0}', space=vmem, size = 0x1000, scoped, tag = 'input window, operand 2, single buffered']
    #allocation8 [shape = 'u8[8192]{0}', space=vmem, size = 0x2000, scoped, tag = 'output window, operand 0']
    %10 = vsyncpa [#allocation3], 0
    %s11 = scalar_lea.sflag [#allocation3], 1
    %12 = vsyncpa %s11, 0
    %13 = vsyncpa [#allocation6], 0
    %14 = vsyncpa [#allocation4], 0
    %s15 = scalar_lea.sflag [#allocation4], 1
    %16 = vsyncpa %s15, 0
    loop: start=0, step=1, limit=4
    $region2: #{tpu_custom_call.1} parent=1 // loop_pre_header
      _
    $region3: #{tpu_custom_call.1} parent=1 // loop_header
      %s18 = sphi 0, %s22
      %p19 = scmp.ge.s32.totalorder %s18, 4
      %s28 = sphi 0, %s30
      %s31 = sphi 0, %s28
      %s32 = sphi 0, %s31
      %s48 = sphi 0, %s32
      %s52 = sphi 0, %s52
      %s54 = sphi 0, %s52
      %s55 = sphi 0, %s54
      %s69 = sphi 0, %s55
      %s73 = sphi 0, %s73
      %s75 = sphi 0, %s73
      %s76 = sphi 0, %s75
      %s90 = sphi 0, %s76
      %s94 = sphi 0, %s94
      %s96 = sphi 0, %s94
      %s97 = sphi 0, %s96
      %s111 = sphi 0, %s97
      %s117 = sphi 0, %s119
      %s120 = sphi 0, %s117
      %s121 = sphi 0, %s120
      %s137 = sphi 0, %s121
      %s143 = sphi 0, %s145
      %s146 = sphi 0, %s143
      %s147 = sphi 0, %s146
      %s163 = sphi 0, %s147
    $region4: #{tpu_custom_call.1} parent=1 // loop_header_branch
      %21 = sbr.rel (%p19) target = $region8
    $region5: #{tpu_custom_call.1} parent=1 // loop_body
      %s23 = ssub.s32 %s18, 1
      %s24 = ssub.s32 %s18, 2
      %s25 = sadd.s32 %s18, 1
      %s26 = ssub.s32 %s18, %s25
      %p27 = scmp.eq.s32.totalorder %s26, 0
      %s29 = sadd.s32 %s28, 1
      %s30 = scalar_select %p27, %s28, %s29
      %p33 = pneg %p27
      %p34 = scmp.eq.s32.totalorder %s18, 1
      %p35 = por %p33, %p34
      %p36 = scmp.ne.s32.totalorder %s28, %s31
      %p37 = scmp.eq.s32.totalorder %s18, 0
      %p38 = por %p36, %p37
      %p39 = scmp.ne.s32.totalorder %s28, %s31
      %p40 = scmp.eq.s32.totalorder %s23, 1
      %p41 = por %p39, %p40
      %p42 = scmp.ne.s32.totalorder %s31, %s32
      %p43 = scmp.eq.s32.totalorder %s23, 0
      %p44 = por %p42, %p43
      %p45 = scmp.ne.s32.totalorder %s31, %s32
      %p46 = scmp.eq.s32.totalorder %s24, 1
      %p47 = por %p45, %p46
      %p49 = scmp.ne.s32.totalorder %s32, %s48
      %p50 = scmp.eq.s32.totalorder %s24, 0
      %p51 = por %p49, %p50
      %s53 = sadd.s32 %s52, 1
      %p56 = scmp.eq.s32.totalorder %s18, 1
      %p57 = scmp.ne.s32.totalorder %s52, %s54
      %p58 = scmp.eq.s32.totalorder %s18, 0
      %p59 = por %p57, %p58
      %p60 = scmp.ne.s32.totalorder %s52, %s54
      %p61 = scmp.eq.s32.totalorder %s23, 1
      %p62 = por %p60, %p61
      %p63 = scmp.ne.s32.totalorder %s54, %s55
      %p64 = scmp.eq.s32.totalorder %s23, 0
      %p65 = por %p63, %p64
      %p66 = scmp.ne.s32.totalorder %s54, %s55
      %p67 = scmp.eq.s32.totalorder %s24, 1
      %p68 = por %p66, %p67
      %p70 = scmp.ne.s32.totalorder %s55, %s69
      %p71 = scmp.eq.s32.totalorder %s24, 0
      %p72 = por %p70, %p71
      %s74 = sadd.s32 %s73, 1
      %p77 = scmp.eq.s32.totalorder %s18, 1
      %p78 = scmp.ne.s32.totalorder %s73, %s75
      %p79 = scmp.eq.s32.totalorder %s18, 0
      %p80 = por %p78, %p79
      %p81 = scmp.ne.s32.totalorder %s73, %s75
      %p82 = scmp.eq.s32.totalorder %s23, 1
      %p83 = por %p81, %p82
      %p84 = scmp.ne.s32.totalorder %s75, %s76
      %p85 = scmp.eq.s32.totalorder %s23, 0
      %p86 = por %p84, %p85
      %p87 = scmp.ne.s32.totalorder %s75, %s76
      %p88 = scmp.eq.s32.totalorder %s24, 1
      %p89 = por %p87, %p88
      %p91 = scmp.ne.s32.totalorder %s76, %s90
      %p92 = scmp.eq.s32.totalorder %s24, 0
      %p93 = por %p91, %p92
      %s95 = sadd.s32 %s94, 1
      %p98 = scmp.eq.s32.totalorder %s18, 1
      %p99 = scmp.ne.s32.totalorder %s94, %s96
      %p100 = scmp.eq.s32.totalorder %s18, 0
      %p101 = por %p99, %p100
      %p102 = scmp.ne.s32.totalorder %s94, %s96
      %p103 = scmp.eq.s32.totalorder %s23, 1
      %p104 = por %p102, %p103
      %p105 = scmp.ne.s32.totalorder %s96, %s97
      %p106 = scmp.eq.s32.totalorder %s23, 0
      %p107 = por %p105, %p106
      %p108 = scmp.ne.s32.totalorder %s96, %s97
      %p109 = scmp.eq.s32.totalorder %s24, 1
      %p110 = por %p108, %p109
      %p112 = scmp.ne.s32.totalorder %s97, %s111
      %p113 = scmp.eq.s32.totalorder %s24, 0
      %p114 = por %p112, %p113
      %s115 = ssub.s32 %s18, %s25
      %p116 = scmp.eq.s32.totalorder %s115, 0
      %s118 = sadd.s32 %s117, 1
      %s119 = scalar_select %p116, %s117, %s118
      %p122 = pneg %p116
      %p123 = scmp.eq.s32.totalorder %s18, 1
      %p124 = por %p122, %p123
      %p125 = scmp.ne.s32.totalorder %s117, %s120
      %p126 = scmp.eq.s32.totalorder %s18, 0
      %p127 = por %p125, %p126
      %p128 = scmp.ne.s32.totalorder %s117, %s120
      %p129 = scmp.eq.s32.totalorder %s23, 1
      %p130 = por %p128, %p129
      %p131 = scmp.ne.s32.totalorder %s120, %s121
      %p132 = scmp.eq.s32.totalorder %s23, 0
      %p133 = por %p131, %p132
      %p134 = scmp.ne.s32.totalorder %s120, %s121
      %p135 = scmp.eq.s32.totalorder %s24, 1
      %p136 = por %p134, %p135
      %p138 = scmp.ne.s32.totalorder %s121, %s137
      %p139 = scmp.eq.s32.totalorder %s24, 0
      %p140 = por %p138, %p139
      %s141 = ssub.s32 %s18, %s25
      %p142 = scmp.eq.s32.totalorder %s141, 0
      %s144 = sadd.s32 %s143, 1
      %s145 = scalar_select %p142, %s143, %s144
      %p148 = pneg %p142
      %p149 = scmp.eq.s32.totalorder %s18, 1
      %p150 = por %p148, %p149
      %p151 = scmp.ne.s32.totalorder %s143, %s146
      %p152 = scmp.eq.s32.totalorder %s18, 0
      %p153 = por %p151, %p152
      %p154 = scmp.ne.s32.totalorder %s143, %s146
      %p155 = scmp.eq.s32.totalorder %s23, 1
      %p156 = por %p154, %p155
      %p157 = scmp.ne.s32.totalorder %s146, %s147
      %p158 = scmp.eq.s32.totalorder %s23, 0
      %p159 = por %p157, %p158
      %p160 = scmp.ne.s32.totalorder %s146, %s147
      %p161 = scmp.eq.s32.totalorder %s24, 1
      %p162 = por %p160, %p161
      %p164 = scmp.ne.s32.totalorder %s147, %s163
      %p165 = scmp.eq.s32.totalorder %s24, 0
      %p166 = por %p164, %p165
      %p167 = scmp.le.s32.totalorder 1, %s18
      %p168 = scmp.lt.s32.totalorder %s18, 3
      %p169 = pnand %p167, %p168
      %p170 = pneg %p169
      // Predicated region
      $region9: #{tpu_custom_call.1} parent=5 // pred_check
        _
      $region10: #{tpu_custom_call.1} parent=5 // pred_check_branch
        %172 = sbr.rel (%p169) target = $region12
      $region11: #{tpu_custom_call.1} parent=5 // pred_region
        %s173 = ssub.s32 %s18, 1
        // Predicated region
        $region13: #{tpu_custom_call.1} parent=11 // pred_check
          %p174 = pneg %p65
        $region14: #{tpu_custom_call.1} parent=11 // pred_check_branch
          %176 = sbr.rel (%p174) target = $region16
        $region15: #{tpu_custom_call.1} parent=11 // pred_region
          %s178 = ssub.s32 512, 512
          %179 = vsyncadd [#allocation6], %s178
          %s180 = sshll.u32 [#allocation5], 4
          %s181 = int_to_ptr.vmem [resolvable:$true] %s180
          %186 = dma.hbm_to_vmem [thread:$0]  %s1, 512, %s181, [#allocation6], 128, 128, 8
        $region16: #{tpu_custom_call.1} parent=11 // pred_fallthru
          _
        // Predicated region
        $region17: #{tpu_custom_call.1} parent=11 // pred_check
          %p187 = pneg %p86
        $region18: #{tpu_custom_call.1} parent=11 // pred_check_branch
          %189 = sbr.rel (%p187) target = $region20
        $region19: #{tpu_custom_call.1} parent=11 // pred_region
          %s191 = ssub.s32 128, 128
          %192 = vsyncadd [#allocation6], %s191
          %s194 = sshll.u32 [#allocation7], 4
          %s195 = int_to_ptr.vmem [resolvable:$true] %s194
          %197 = dma.hbm_to_vmem [thread:$0]  %s2, 128, %s195, [#allocation6]
        $region20: #{tpu_custom_call.1} parent=11 // pred_fallthru
          _
        // Predicated region
        $region21: #{tpu_custom_call.1} parent=11 // pred_check
          %p198 = pneg %p107
        $region22: #{tpu_custom_call.1} parent=11 // pred_check_branch
          %200 = sbr.rel (%p198) target = $region24
        $region23: #{tpu_custom_call.1} parent=11 // pred_region
          _
        $region24: #{tpu_custom_call.1} parent=11 // pred_fallthru
          _
      $region12: #{tpu_custom_call.1} parent=5 // pred_fallthru
        _
      %p201 = scmp.lt.s32.totalorder %s18, 2
      // Predicated region
      $region25: #{tpu_custom_call.1} parent=5 // pred_check
        %p202 = pneg %p201
      $region26: #{tpu_custom_call.1} parent=5 // pred_check_branch
        %204 = sbr.rel (%p202) target = $region28
      $region27: #{tpu_custom_call.1} parent=5 // pred_region
        // Predicated region
        $region29: #{tpu_custom_call.1} parent=27 // pred_check
          %p205 = pneg %p38
        $region30: #{tpu_custom_call.1} parent=27 // pred_check_branch
          %207 = sbr.rel (%p205) target = $region32
        $region31: #{tpu_custom_call.1} parent=27 // pred_region
          %s208 = sand.u32 %s28, 1
          %s209 = scalar_lea.sflag [#allocation3], %s208
          %s210 = sand.u32 %s28, 1
          %s211 = smul.addr %s210, 8
          %s212 = scalar_lea.vmem [#allocation2], %s211
          %s214 = ssub.s32 128, 128
          %215 = vsyncadd %s209, %s214
          %s216 = smul.addr %s18, 128
          %s217 = scalar_lea.hbm %s0, %s216
          %s219 = sshll.u32 %s212, 4
          %s220 = int_to_ptr.vmem [resolvable:$true] %s219
          %222 = dma.hbm_to_vmem [thread:$0]  %s217, 128, %s220, %s209
        $region32: #{tpu_custom_call.1} parent=27 // pred_fallthru
          _
        // Predicated region
        $region33: #{tpu_custom_call.1} parent=27 // pred_check
          %p223 = pneg %p127
        $region34: #{tpu_custom_call.1} parent=27 // pred_check_branch
          %225 = sbr.rel (%p223) target = $region36
        $region35: #{tpu_custom_call.1} parent=27 // pred_region
          %p226 = scmp.lt.s32.totalorder %s18, 1
          %s227 = scalar_select %p226, %s18, 1
          %s228 = scalar_lea.vmem %s4, %s227
        $region36: #{tpu_custom_call.1} parent=27 // pred_fallthru
          _
      $region28: #{tpu_custom_call.1} parent=5 // pred_fallthru
        _
      %p229 = scmp.le.s32.totalorder 1, %s18
      %p230 = scmp.lt.s32.totalorder %s18, 3
      %p231 = pnand %p229, %p230
      %p232 = pneg %p231
      // Predicated region
      $region37: #{tpu_custom_call.1} parent=5 // pred_check
        _
      $region38: #{tpu_custom_call.1} parent=5 // pred_check_branch
        %234 = sbr.rel (%p231) target = $region40
      $region39: #{tpu_custom_call.1} parent=5 // pred_region
        %s235 = ssub.s32 %s18, 1
        %s236 = sand.u32 %s31, 1
        %s237 = scalar_lea.sflag [#allocation3], %s236
        %s238 = sand.u32 %s31, 1
        %s239 = smul.addr %s238, 8
        %s240 = scalar_lea.vmem [#allocation2], %s239
        // Predicated region
        $region41: #{tpu_custom_call.1} parent=39 // pred_check
          %p241 = pneg %p44
        $region42: #{tpu_custom_call.1} parent=39 // pred_check_branch
          %243 = sbr.rel (%p241) target = $region44
        $region43: #{tpu_custom_call.1} parent=39 // pred_region
          %244 = dma.done %s237, 128
        $region44: #{tpu_custom_call.1} parent=39 // pred_fallthru
          _
        // Predicated region
        $region45: #{tpu_custom_call.1} parent=39 // pred_check
          %p245 = pneg %p65
        $region46: #{tpu_custom_call.1} parent=39 // pred_check_branch
          %247 = sbr.rel (%p245) target = $region48
        $region47: #{tpu_custom_call.1} parent=39 // pred_region
          %248 = dma.done [#allocation6], 512
        $region48: #{tpu_custom_call.1} parent=39 // pred_fallthru
          _
        // Predicated region
        $region49: #{tpu_custom_call.1} parent=39 // pred_check
          %p249 = pneg %p86
        $region50: #{tpu_custom_call.1} parent=39 // pred_check_branch
          %251 = sbr.rel (%p249) target = $region52
        $region51: #{tpu_custom_call.1} parent=39 // pred_region
          %252 = dma.done [#allocation6], 128
        $region52: #{tpu_custom_call.1} parent=39 // pred_fallthru
          _
        %s253 = sand.u32 %s31, 1
        %s254 = scalar_lea.sflag [#allocation3], %s253
        %s255 = sand.u32 %s31, 1
        %s256 = smul.addr %s255, 8
        %s257 = scalar_lea.vmem [#allocation2], %s256
        %p258 = pneg %p44
        %p259 = pneg %p41
        %p260 = pneg %p65
        %p261 = pneg %p62
        %p262 = pneg %p86
        %p263 = pneg %p83
        %p264 = pneg %p107
        %p265 = pneg %p104
        %p266 = scmp.lt.s32.totalorder %s23, 1
        %s267 = scalar_select %p266, %s23, 1
        %s268 = scalar_lea.vmem %s4, %s267
        %p269 = pneg %p133
        %p270 = pneg %p130
        %p271 = pneg %p159
        %p272 = pneg %p156
        %s273 = sand.u32 %s146, 1
        %s274 = scalar_lea.sflag [#allocation4], %s273
        %s275 = sand.u32 %s146, 1
        %s276 = smul.addr %s275, 8
        %s277 = scalar_lea.vmem [#allocation8], %s276
        %p278 = scmp.lt.s32.totalorder %s23, 1
        %s279 = scalar_select %p278, %s23, 1
        %s280 = scalar_lea.vmem %s4, %s279
        %v281 = vld [vmem:[%s240] sm:$0xff]
        %v282 = vld [vmem:[#allocation5] sm:$0xff]
        %v283 = vld [vmem:[#allocation5 + $0x8] sm:$0xff]
        %v284 = vld [vmem:[#allocation5 + $0x10] sm:$0xff]
        %v285 = vld [vmem:[#allocation5 + $0x18] sm:$0xff]
        %vm286 = vcmask 261120
        %v288 = vsel %vm286, %v281, 0
        %290 = vmatprep.subr.mxu0 0.0
        %291 = vmatpush1.msra.mxu0 %v282
        %292 = vmatprep.subr.mxu0 0.0
        %293 = vmatpush1.msra.mxu0 %v283
        %294 = vmatprep.subr.mxu0 0.0
        %295 = vmatpush1.msra.mxu0 %v284
        %296 = vmatprep.subr.mxu0 0.0
        %297 = vmatpush1.msra.mxu0 %v285
        %298 = vmatprep.subr.mxu0 0.0
        %299 = vmatpush1.msra.mxu0 0.0
        %300 = vmatprep.subr.mxu0 0.0
        %301 = vmatpush1.msra.mxu0 0.0
        %302 = vmatprep.subr.mxu0 0.0
        %303 = vmatpush1.msra.mxu0 0.0
        %304 = vmatprep.subr.mxu0 0.0
        %305 = vmatpush1.msra.mxu0 0.0
        %306 = vmatprep.subr.mxu0 0.0
        %307 = vmatpush1.msra.mxu0 0.0
        %308 = vmatprep.subr.mxu0 0.0
        %309 = vmatpush1.msra.mxu0 0.0
        %310 = vmatprep.subr.mxu0 0.0
        %311 = vmatpush1.msra.mxu0 0.0
        %312 = vmatprep.subr.mxu0 0.0
        %313 = vmatpush1.msra.mxu0 0.0
        %314 = vmatprep.subr.mxu0 0.0
        %315 = vmatpush1.msra.mxu0 0.0
        %316 = vmatprep.subr.mxu0 0.0
        %317 = vmatpush1.msra.mxu0 0.0
        %318 = vmatprep.subr.mxu0 0.0
        %319 = vmatpush1.msra.mxu0 0.0
        %320 = vmatprep.subr.mxu0 0.0
        %321 = vmatpush1.msra.mxu0 0.0
        %322 = vmatprep.subr.mxu0 0.0
        %323 = vmatpush1.msra.mxu0 0.0
        %324 = vmatprep.subr.mxu0 0.0
        %325 = vmatpush1.msra.mxu0 0.0
        %326 = vmatprep.subr.mxu0 0.0
        %327 = vmatpush1.msra.mxu0 0.0
        %328 = vmatprep.subr.mxu0 0.0
        %329 = vmatpush1.msra.mxu0 0.0
        %330 = vmatprep.subr.mxu0 0.0
        %331 = vmatpush1.msra.mxu0 0.0
        %332 = vmatprep.subr.mxu0 0.0
        %333 = vmatpush1.msra.mxu0 0.0
        %334 = vmatprep.subr.mxu0 0.0
        %335 = vmatpush1.msra.mxu0 0.0
        %336 = vmatprep.subr.mxu0 0.0
        %337 = vmatpush1.msra.mxu0 0.0
        %338 = vmatprep.subr.mxu0 0.0
        %339 = vmatpush1.msra.mxu0 0.0
        %340 = vmatprep.subr.mxu0 0.0
        %341 = vmatpush1.msra.mxu0 0.0
        %342 = vmatprep.subr.mxu0 0.0
        %343 = vmatpush1.msra.mxu0 0.0
        %344 = vmatprep.subr.mxu0 0.0
        %345 = vmatpush1.msra.mxu0 0.0
        %346 = vmatprep.subr.mxu0 0.0
        %347 = vmatpush1.msra.mxu0 0.0
        %348 = vmatprep.subr.mxu0 0.0
        %349 = vmatpush1.msra.mxu0 0.0
        %350 = vmatprep.subr.mxu0 0.0
        %351 = vmatpush1.msra.mxu0 0.0
        %352 = vmatprep.subr.mxu0 0.0
        %353 = vmatpush1.msra.mxu0 0.0
        %354 = vmatprep.mubr.f32.mxu0 0.0
        %355 = vmatmul.mubr.f32.gmra.mrb[0].mxu0 %v288
        %v356 = vpop.f32.mrb[0].mxu0
        %v357 = vadd.f32 0.0, %v356
        %v358 = vpop.f32.mrb[0].mxu0
        %359 = vdwg.mxu0
        %361 = vrot.lane.b32.xlu0 %v357, 120
        %v362 = vpop.permute.xlu0 %361
        %364 = vrot.lane.b32.xlu0 %v357, 112
        %v365 = vpop.permute.xlu0 %364
        %367 = vrot.lane.b32.xlu0 %v357, 104
        %v368 = vpop.permute.xlu0 %367
        %v370 = vmul.f32 %v357, 0.35355338
        %v371 = vmul.f32 %v362, 0.35355338
        %v372 = vmul.f32 %v365, 0.35355338
        %v373 = vmul.f32 %v368, 0.35355338
        %v374 = vld [vmem:[#allocation7] sm:$0xff]
        %v375 = vld [vmem:[%s3] sm:$0xff]
        %v376 = vmul.f32 %v370, %v374
        %v377 = vmul.f32 %v371, %v374
        %v378 = vmul.f32 %v372, %v374
        %v379 = vmul.f32 %v373, %v374
        %384 = vrot.lane.b32.xlu0 %v370, 124
        %v385 = vpop.permute.xlu0 %384
        %386 = vrot.lane.b32.xlu0 %v371, 124
        %v387 = vpop.permute.xlu0 %386
        %388 = vrot.lane.b32.xlu0 %v372, 124
        %v389 = vpop.permute.xlu0 %388
        %390 = vrot.lane.b32.xlu0 %v373, 124
        %v391 = vpop.permute.xlu0 %390
        %396 = vrot.lane.b32.xlu0 %v370, 4
        %v397 = vpop.permute.xlu0 %396
        %398 = vrot.lane.b32.xlu0 %v371, 4
        %v399 = vpop.permute.xlu0 %398
        %400 = vrot.lane.b32.xlu0 %v372, 4
        %v401 = vpop.permute.xlu0 %400
        %402 = vrot.lane.b32.xlu0 %v373, 4
        %v403 = vpop.permute.xlu0 %402
        %vm408 = vcmask 31744
        %v409 = vsel %vm408, %v385, %v397
        %v410 = vsel %vm408, %v387, %v399
        %v411 = vsel %vm408, %v389, %v401
        %v412 = vsel %vm408, %v391, %v403
        %v413 = vmul.f32 %v409, %v375
        %v414 = vmul.f32 %v410, %v375
        %v415 = vmul.f32 %v411, %v375
        %v416 = vmul.f32 %v412, %v375
        %v417 = vadd.f32 %v376, %v413
        %v418 = vadd.f32 %v377, %v414
        %v419 = vadd.f32 %v378, %v415
        %v420 = vadd.f32 %v379, %v416
        %422 = vrot.lane.b32.xlu0 %v374, 32
        %v423 = vpop.permute.xlu0 %422
        %v425 = vmul.f32 %v357, %v423
        %v426 = vmul.f32 %v362, %v423
        %v427 = vmul.f32 %v365, %v423
        %v428 = vmul.f32 %v368, %v423
        %429 = vrot.lane.b32.xlu0 %v357, 92
        %v430 = vpop.permute.xlu0 %429
        %431 = vrot.lane.b32.xlu0 %v362, 92
        %v432 = vpop.permute.xlu0 %431
        %433 = vrot.lane.b32.xlu0 %v365, 92
        %v434 = vpop.permute.xlu0 %433
        %435 = vrot.lane.b32.xlu0 %v368, 92
        %v436 = vpop.permute.xlu0 %435
        %441 = vrot.lane.b32.xlu0 %v357, 100
        %v442 = vpop.permute.xlu0 %441
        %443 = vrot.lane.b32.xlu0 %v362, 100
        %v444 = vpop.permute.xlu0 %443
        %445 = vrot.lane.b32.xlu0 %v365, 100
        %v446 = vpop.permute.xlu0 %445
        %447 = vrot.lane.b32.xlu0 %v368, 100
        %v448 = vpop.permute.xlu0 %447
        %v453 = vsel %vm408, %v430, %v442
        %v454 = vsel %vm408, %v432, %v444
        %v455 = vsel %vm408, %v434, %v446
        %v456 = vsel %vm408, %v436, %v448
        %v457 = vmul.f32 %v453, %v375
        %v458 = vmul.f32 %v454, %v375
        %v459 = vmul.f32 %v455, %v375
        %v460 = vmul.f32 %v456, %v375
        %465 = vrot.lane.b32.xlu0 %v457, 32
        %v466 = vpop.permute.xlu0 %465
        %467 = vrot.lane.b32.xlu0 %v458, 32
        %v468 = vpop.permute.xlu0 %467
        %469 = vrot.lane.b32.xlu0 %v459, 32
        %v470 = vpop.permute.xlu0 %469
        %471 = vrot.lane.b32.xlu0 %v460, 32
        %v472 = vpop.permute.xlu0 %471
        %v477 = vadd.f32 %v425, %v466
        %v478 = vadd.f32 %v426, %v468
        %v479 = vadd.f32 %v427, %v470
        %v480 = vadd.f32 %v428, %v472
        %v481 = vld [vmem:[%s280] sm:$0x1]
        %v483 = vlaneseq
        %v484 = vshrl.u32 %v483, 7
        %v485 = vsub.s32 0, %v484
        %v486 = vrot.slane %v481, %v485
        %489 = vrot.lane.b32.xlu0 %v477, 96
        %v490 = vpop.permute.xlu0 %489
        %vm491 = vcmask 64512
        %v493 = vsel %vm491, %v417, 0
        %v495 = vsel %vm491, %v490, 0
        %497 = vmatprep.subr.mxu0 0.0
        %498 = vmatpush1.xpose.msra.mxu0 %v495
        %499 = vmatprep.subr.mxu0 0.0
        %500 = vmatpush1.xpose.msra.mxu0 0.0
        %501 = vmatprep.subr.mxu0 0.0
        %502 = vmatpush1.xpose.msra.mxu0 0.0
        %503 = vmatprep.subr.mxu0 0.0
        %504 = vmatpush1.xpose.msra.mxu0 0.0
        %505 = vmatprep.subr.mxu0 0.0
        %506 = vmatpush1.xpose.msra.mxu0 0.0
        %507 = vmatprep.subr.mxu0 0.0
        %508 = vmatpush1.xpose.msra.mxu0 0.0
        %509 = vmatprep.subr.mxu0 0.0
        %510 = vmatpush1.xpose.msra.mxu0 0.0
        %511 = vmatprep.subr.mxu0 0.0
        %512 = vmatpush1.xpose.msra.mxu0 0.0
        %513 = vmatprep.subr.mxu0 0.0
        %514 = vmatpush1.xpose.msra.mxu0 0.0
        %515 = vmatprep.subr.mxu0 0.0
        %516 = vmatpush1.xpose.msra.mxu0 0.0
        %517 = vmatprep.subr.mxu0 0.0
        %518 = vmatpush1.xpose.msra.mxu0 0.0
        %519 = vmatprep.subr.mxu0 0.0
        %520 = vmatpush1.xpose.msra.mxu0 0.0
        %521 = vmatprep.subr.mxu0 0.0
        %522 = vmatpush1.xpose.msra.mxu0 0.0
        %523 = vmatprep.subr.mxu0 0.0
        %524 = vmatpush1.xpose.msra.mxu0 0.0
        %525 = vmatprep.subr.mxu0 0.0
        %526 = vmatpush1.xpose.msra.mxu0 0.0
        %527 = vmatprep.subr.mxu0 0.0
        %528 = vmatpush1.xpose.msra.mxu0 0.0
        %529 = vmatprep.subr.mxu0 0.0
        %530 = vmatpush1.xpose.msra.mxu0 0.0
        %531 = vmatprep.subr.mxu0 0.0
        %532 = vmatpush1.xpose.msra.mxu0 0.0
        %533 = vmatprep.subr.mxu0 0.0
        %534 = vmatpush1.xpose.msra.mxu0 0.0
        %535 = vmatprep.subr.mxu0 0.0
        %536 = vmatpush1.xpose.msra.mxu0 0.0
        %537 = vmatprep.subr.mxu0 0.0
        %538 = vmatpush1.xpose.msra.mxu0 0.0
        %539 = vmatprep.subr.mxu0 0.0
        %540 = vmatpush1.xpose.msra.mxu0 0.0
        %541 = vmatprep.subr.mxu0 0.0
        %542 = vmatpush1.xpose.msra.mxu0 0.0
        %543 = vmatprep.subr.mxu0 0.0
        %544 = vmatpush1.xpose.msra.mxu0 0.0
        %545 = vmatprep.subr.mxu0 0.0
        %546 = vmatpush1.xpose.msra.mxu0 0.0
        %547 = vmatprep.subr.mxu0 0.0
        %548 = vmatpush1.xpose.msra.mxu0 0.0
        %549 = vmatprep.subr.mxu0 0.0
        %550 = vmatpush1.xpose.msra.mxu0 0.0
        %551 = vmatprep.subr.mxu0 0.0
        %552 = vmatpush1.xpose.msra.mxu0 0.0
        %553 = vmatprep.subr.mxu0 0.0
        %554 = vmatpush1.xpose.msra.mxu0 0.0
        %555 = vmatprep.subr.mxu0 0.0
        %556 = vmatpush1.xpose.msra.mxu0 0.0
        %557 = vmatprep.subr.mxu0 0.0
        %558 = vmatpush1.xpose.msra.mxu0 0.0
        %559 = vmatprep.subr.mxu0 0.0
        %560 = vmatpush1.xpose.msra.mxu0 0.0
        %561 = vmatprep.mubr.f32.mxu0 0.0
        %562 = vmatmul.mubr.f32.gmra.mrb[0].mxu0 %v493
        %v563 = vpop.f32.mrb[0].mxu0
        %v564 = vadd.f32 %v486, %v563
        %v565 = vpop.f32.mrb[0].mxu0
        %566 = vdwg.mxu0
        %568 = vrot.lane.b32.xlu0 %v478, 96
        %v569 = vpop.permute.xlu0 %568
        %v571 = vsel %vm491, %v418, 0
        %v573 = vsel %vm491, %v569, 0
        %575 = vmatprep.subr.mxu0 0.0
        %576 = vmatpush1.xpose.msra.mxu0 %v573
        %577 = vmatprep.subr.mxu0 0.0
        %578 = vmatpush1.xpose.msra.mxu0 0.0
        %579 = vmatprep.subr.mxu0 0.0
        %580 = vmatpush1.xpose.msra.mxu0 0.0
        %581 = vmatprep.subr.mxu0 0.0
        %582 = vmatpush1.xpose.msra.mxu0 0.0
        %583 = vmatprep.subr.mxu0 0.0
        %584 = vmatpush1.xpose.msra.mxu0 0.0
        %585 = vmatprep.subr.mxu0 0.0
        %586 = vmatpush1.xpose.msra.mxu0 0.0
        %587 = vmatprep.subr.mxu0 0.0
        %588 = vmatpush1.xpose.msra.mxu0 0.0
        %589 = vmatprep.subr.mxu0 0.0
        %590 = vmatpush1.xpose.msra.mxu0 0.0
        %591 = vmatprep.subr.mxu0 0.0
        %592 = vmatpush1.xpose.msra.mxu0 0.0
        %593 = vmatprep.subr.mxu0 0.0
        %594 = vmatpush1.xpose.msra.mxu0 0.0
        %595 = vmatprep.subr.mxu0 0.0
        %596 = vmatpush1.xpose.msra.mxu0 0.0
        %597 = vmatprep.subr.mxu0 0.0
        %598 = vmatpush1.xpose.msra.mxu0 0.0
        %599 = vmatprep.subr.mxu0 0.0
        %600 = vmatpush1.xpose.msra.mxu0 0.0
        %601 = vmatprep.subr.mxu0 0.0
        %602 = vmatpush1.xpose.msra.mxu0 0.0
        %603 = vmatprep.subr.mxu0 0.0
        %604 = vmatpush1.xpose.msra.mxu0 0.0
        %605 = vmatprep.subr.mxu0 0.0
        %606 = vmatpush1.xpose.msra.mxu0 0.0
        %607 = vmatprep.subr.mxu0 0.0
        %608 = vmatpush1.xpose.msra.mxu0 0.0
        %609 = vmatprep.subr.mxu0 0.0
        %610 = vmatpush1.xpose.msra.mxu0 0.0
        %611 = vmatprep.subr.mxu0 0.0
        %612 = vmatpush1.xpose.msra.mxu0 0.0
        %613 = vmatprep.subr.mxu0 0.0
        %614 = vmatpush1.xpose.msra.mxu0 0.0
        %615 = vmatprep.subr.mxu0 0.0
        %616 = vmatpush1.xpose.msra.mxu0 0.0
        %617 = vmatprep.subr.mxu0 0.0
        %618 = vmatpush1.xpose.msra.mxu0 0.0
        %619 = vmatprep.subr.mxu0 0.0
        %620 = vmatpush1.xpose.msra.mxu0 0.0
        %621 = vmatprep.subr.mxu0 0.0
        %622 = vmatpush1.xpose.msra.mxu0 0.0
        %623 = vmatprep.subr.mxu0 0.0
        %624 = vmatpush1.xpose.msra.mxu0 0.0
        %625 = vmatprep.subr.mxu0 0.0
        %626 = vmatpush1.xpose.msra.mxu0 0.0
        %627 = vmatprep.subr.mxu0 0.0
        %628 = vmatpush1.xpose.msra.mxu0 0.0
        %629 = vmatprep.subr.mxu0 0.0
        %630 = vmatpush1.xpose.msra.mxu0 0.0
        %631 = vmatprep.subr.mxu0 0.0
        %632 = vmatpush1.xpose.msra.mxu0 0.0
        %633 = vmatprep.subr.mxu0 0.0
        %634 = vmatpush1.xpose.msra.mxu0 0.0
        %635 = vmatprep.subr.mxu0 0.0
        %636 = vmatpush1.xpose.msra.mxu0 0.0
        %637 = vmatprep.subr.mxu0 0.0
        %638 = vmatpush1.xpose.msra.mxu0 0.0
        %639 = vmatprep.mubr.f32.mxu0 0.0
        %640 = vmatmul.mubr.f32.gmra.mrb[0].mxu0 %v571
        %v641 = vpop.f32.mrb[0].mxu0
        %v642 = vadd.f32 %v486, %v641
        %v643 = vpop.f32.mrb[0].mxu0
        %644 = vdwg.mxu0
        %646 = vrot.lane.b32.xlu0 %v479, 96
        %v647 = vpop.permute.xlu0 %646
        %v649 = vsel %vm491, %v419, 0
        %v651 = vsel %vm491, %v647, 0
        %653 = vmatprep.subr.mxu0 0.0
        %654 = vmatpush1.xpose.msra.mxu0 %v651
        %655 = vmatprep.subr.mxu0 0.0
        %656 = vmatpush1.xpose.msra.mxu0 0.0
        %657 = vmatprep.subr.mxu0 0.0
        %658 = vmatpush1.xpose.msra.mxu0 0.0
        %659 = vmatprep.subr.mxu0 0.0
        %660 = vmatpush1.xpose.msra.mxu0 0.0
        %661 = vmatprep.subr.mxu0 0.0
        %662 = vmatpush1.xpose.msra.mxu0 0.0
        %663 = vmatprep.subr.mxu0 0.0
        %664 = vmatpush1.xpose.msra.mxu0 0.0
        %665 = vmatprep.subr.mxu0 0.0
        %666 = vmatpush1.xpose.msra.mxu0 0.0
        %667 = vmatprep.subr.mxu0 0.0
        %668 = vmatpush1.xpose.msra.mxu0 0.0
        %669 = vmatprep.subr.mxu0 0.0
        %670 = vmatpush1.xpose.msra.mxu0 0.0
        %671 = vmatprep.subr.mxu0 0.0
        %672 = vmatpush1.xpose.msra.mxu0 0.0
        %673 = vmatprep.subr.mxu0 0.0
        %674 = vmatpush1.xpose.msra.mxu0 0.0
        %675 = vmatprep.subr.mxu0 0.0
        %676 = vmatpush1.xpose.msra.mxu0 0.0
        %677 = vmatprep.subr.mxu0 0.0
        %678 = vmatpush1.xpose.msra.mxu0 0.0
        %679 = vmatprep.subr.mxu0 0.0
        %680 = vmatpush1.xpose.msra.mxu0 0.0
        %681 = vmatprep.subr.mxu0 0.0
        %682 = vmatpush1.xpose.msra.mxu0 0.0
        %683 = vmatprep.subr.mxu0 0.0
        %684 = vmatpush1.xpose.msra.mxu0 0.0
        %685 = vmatprep.subr.mxu0 0.0
        %686 = vmatpush1.xpose.msra.mxu0 0.0
        %687 = vmatprep.subr.mxu0 0.0
        %688 = vmatpush1.xpose.msra.mxu0 0.0
        %689 = vmatprep.subr.mxu0 0.0
        %690 = vmatpush1.xpose.msra.mxu0 0.0
        %691 = vmatprep.subr.mxu0 0.0
        %692 = vmatpush1.xpose.msra.mxu0 0.0
        %693 = vmatprep.subr.mxu0 0.0
        %694 = vmatpush1.xpose.msra.mxu0 0.0
        %695 = vmatprep.subr.mxu0 0.0
        %696 = vmatpush1.xpose.msra.mxu0 0.0
        %697 = vmatprep.subr.mxu0 0.0
        %698 = vmatpush1.xpose.msra.mxu0 0.0
        %699 = vmatprep.subr.mxu0 0.0
        %700 = vmatpush1.xpose.msra.mxu0 0.0
        %701 = vmatprep.subr.mxu0 0.0
        %702 = vmatpush1.xpose.msra.mxu0 0.0
        %703 = vmatprep.subr.mxu0 0.0
        %704 = vmatpush1.xpose.msra.mxu0 0.0
        %705 = vmatprep.subr.mxu0 0.0
        %706 = vmatpush1.xpose.msra.mxu0 0.0
        %707 = vmatprep.subr.mxu0 0.0
        %708 = vmatpush1.xpose.msra.mxu0 0.0
        %709 = vmatprep.subr.mxu0 0.0
        %710 = vmatpush1.xpose.msra.mxu0 0.0
        %711 = vmatprep.subr.mxu0 0.0
        %712 = vmatpush1.xpose.msra.mxu0 0.0
        %713 = vmatprep.subr.mxu0 0.0
        %714 = vmatpush1.xpose.msra.mxu0 0.0
        %715 = vmatprep.subr.mxu0 0.0
        %716 = vmatpush1.xpose.msra.mxu0 0.0
        %717 = vmatprep.mubr.f32.mxu0 0.0
        %718 = vmatmul.mubr.f32.gmra.mrb[0].mxu0 %v649
        %v719 = vpop.f32.mrb[0].mxu0
        %v720 = vadd.f32 %v486, %v719
        %v721 = vpop.f32.mrb[0].mxu0
        %722 = vdwg.mxu0
        %724 = vrot.lane.b32.xlu0 %v480, 96
        %v725 = vpop.permute.xlu0 %724
        %v727 = vsel %vm491, %v420, 0
        %v729 = vsel %vm491, %v725, 0
        %731 = vmatprep.subr.mxu0 0.0
        %732 = vmatpush1.xpose.msra.mxu0 %v729
        %733 = vmatprep.subr.mxu0 0.0
        %734 = vmatpush1.xpose.msra.mxu0 0.0
        %735 = vmatprep.subr.mxu0 0.0
        %736 = vmatpush1.xpose.msra.mxu0 0.0
        %737 = vmatprep.subr.mxu0 0.0
        %738 = vmatpush1.xpose.msra.mxu0 0.0
        %739 = vmatprep.subr.mxu0 0.0
        %740 = vmatpush1.xpose.msra.mxu0 0.0
        %741 = vmatprep.subr.mxu0 0.0
        %742 = vmatpush1.xpose.msra.mxu0 0.0
        %743 = vmatprep.subr.mxu0 0.0
        %744 = vmatpush1.xpose.msra.mxu0 0.0
        %745 = vmatprep.subr.mxu0 0.0
        %746 = vmatpush1.xpose.msra.mxu0 0.0
        %747 = vmatprep.subr.mxu0 0.0
        %748 = vmatpush1.xpose.msra.mxu0 0.0
        %749 = vmatprep.subr.mxu0 0.0
        %750 = vmatpush1.xpose.msra.mxu0 0.0
        %751 = vmatprep.subr.mxu0 0.0
        %752 = vmatpush1.xpose.msra.mxu0 0.0
        %753 = vmatprep.subr.mxu0 0.0
        %754 = vmatpush1.xpose.msra.mxu0 0.0
        %755 = vmatprep.subr.mxu0 0.0
        %756 = vmatpush1.xpose.msra.mxu0 0.0
        %757 = vmatprep.subr.mxu0 0.0
        %758 = vmatpush1.xpose.msra.mxu0 0.0
        %759 = vmatprep.subr.mxu0 0.0
        %760 = vmatpush1.xpose.msra.mxu0 0.0
        %761 = vmatprep.subr.mxu0 0.0
        %762 = vmatpush1.xpose.msra.mxu0 0.0
        %763 = vmatprep.subr.mxu0 0.0
        %764 = vmatpush1.xpose.msra.mxu0 0.0
        %765 = vmatprep.subr.mxu0 0.0
        %766 = vmatpush1.xpose.msra.mxu0 0.0
        %767 = vmatprep.subr.mxu0 0.0
        %768 = vmatpush1.xpose.msra.mxu0 0.0
        %769 = vmatprep.subr.mxu0 0.0
        %770 = vmatpush1.xpose.msra.mxu0 0.0
        %771 = vmatprep.subr.mxu0 0.0
        %772 = vmatpush1.xpose.msra.mxu0 0.0
        %773 = vmatprep.subr.mxu0 0.0
        %774 = vmatpush1.xpose.msra.mxu0 0.0
        %775 = vmatprep.subr.mxu0 0.0
        %776 = vmatpush1.xpose.msra.mxu0 0.0
        %777 = vmatprep.subr.mxu0 0.0
        %778 = vmatpush1.xpose.msra.mxu0 0.0
        %779 = vmatprep.subr.mxu0 0.0
        %780 = vmatpush1.xpose.msra.mxu0 0.0
        %781 = vmatprep.subr.mxu0 0.0
        %782 = vmatpush1.xpose.msra.mxu0 0.0
        %783 = vmatprep.subr.mxu0 0.0
        %784 = vmatpush1.xpose.msra.mxu0 0.0
        %785 = vmatprep.subr.mxu0 0.0
        %786 = vmatpush1.xpose.msra.mxu0 0.0
        %787 = vmatprep.subr.mxu0 0.0
        %788 = vmatpush1.xpose.msra.mxu0 0.0
        %789 = vmatprep.subr.mxu0 0.0
        %790 = vmatpush1.xpose.msra.mxu0 0.0
        %791 = vmatprep.subr.mxu0 0.0
        %792 = vmatpush1.xpose.msra.mxu0 0.0
        %793 = vmatprep.subr.mxu0 0.0
        %794 = vmatpush1.xpose.msra.mxu0 0.0
        %795 = vmatprep.mubr.f32.mxu0 0.0
        %796 = vmatmul.mubr.f32.gmra.mrb[0].mxu0 %v727
        %v797 = vpop.f32.mrb[0].mxu0
        %v798 = vadd.f32 %v486, %v797
        %v799 = vpop.f32.mrb[0].mxu0
        %800 = vdwg.mxu0
        %v801 = vsel %vm491, %v564, -inf
        %802 = vmax.xlane.f32.xlu0 %v801
        %v803 = vpop.xlane.xlu0 %802
        %v804 = vsel %vm491, %v642, -inf
        %805 = vmax.xlane.f32.xlu0 %v804
        %v806 = vpop.xlane.xlu0 %805
        %v807 = vsel %vm491, %v720, -inf
        %808 = vmax.xlane.f32.xlu0 %v807
        %v809 = vpop.xlane.xlu0 %808
        %v810 = vsel %vm491, %v798, -inf
        %811 = vmax.xlane.f32.xlu0 %v810
        %v812 = vpop.xlane.xlu0 %811
        %v813 = vsub.f32 %v564, %v803
        %v814 = vsub.f32 %v642, %v806
        %v815 = vsub.f32 %v720, %v809
        %v816 = vsub.f32 %v798, %v812
        %v817 = vmul.f32 %v813, 1.442695
        %v818 = vpow.pop %v817
        %v819 = vmul.f32 %v814, 1.442695
        %v820 = vpow.pop %v819
        %v821 = vmul.f32 %v815, 1.442695
        %v822 = vpow.pop %v821
        %v823 = vmul.f32 %v816, 1.442695
        %v824 = vpow.pop %v823
        %v825 = vsel %vm491, %v818, 0.0
        %826 = vadd.xlane.f32.xlu0 %v825
        %v827 = vpop.xlane.xlu0 %826
        %v828 = vsel %vm491, %v820, 0.0
        %829 = vadd.xlane.f32.xlu0 %v828
        %v830 = vpop.xlane.xlu0 %829
        %v831 = vsel %vm491, %v822, 0.0
        %832 = vadd.xlane.f32.xlu0 %v831
        %v833 = vpop.xlane.xlu0 %832
        %v834 = vsel %vm491, %v824, 0.0
        %835 = vadd.xlane.f32.xlu0 %v834
        %v836 = vpop.xlane.xlu0 %835
        %v837 = vrcp.pop %v827
        %v838 = vrcp.pop %v830
        %v839 = vrcp.pop %v833
        %v840 = vrcp.pop %v836
        %v841 = vmul.f32 %v818, %v837
        %v842 = vmul.f32 %v820, %v838
        %v843 = vmul.f32 %v822, %v839
        %v844 = vmul.f32 %v824, %v840
        %845 = vrot.lane.b32.xlu0 %v357, 64
        %v846 = vpop.permute.xlu0 %845
        %v849 = vsel %vm491, %v841, 0
        %851 = vmatprep.subr.mxu0 0.0
        %852 = vmatpush1.msra.mxu0 %v846
        %853 = vmatprep.subr.mxu0 0.0
        %854 = vmatpush1.msra.mxu0 0.0
        %855 = vmatprep.subr.mxu0 0.0
        %856 = vmatpush1.msra.mxu0 0.0
        %857 = vmatprep.subr.mxu0 0.0
        %858 = vmatpush1.msra.mxu0 0.0
        %859 = vmatprep.subr.mxu0 0.0
        %860 = vmatpush1.msra.mxu0 0.0
        %861 = vmatprep.subr.mxu0 0.0
        %862 = vmatpush1.msra.mxu0 0.0
        %863 = vmatprep.subr.mxu0 0.0
        %864 = vmatpush1.msra.mxu0 0.0
        %865 = vmatprep.subr.mxu0 0.0
        %866 = vmatpush1.msra.mxu0 0.0
        %867 = vmatprep.subr.mxu0 0.0
        %868 = vmatpush1.msra.mxu0 0.0
        %869 = vmatprep.subr.mxu0 0.0
        %870 = vmatpush1.msra.mxu0 0.0
        %871 = vmatprep.subr.mxu0 0.0
        %872 = vmatpush1.msra.mxu0 0.0
        %873 = vmatprep.subr.mxu0 0.0
        %874 = vmatpush1.msra.mxu0 0.0
        %875 = vmatprep.subr.mxu0 0.0
        %876 = vmatpush1.msra.mxu0 0.0
        %877 = vmatprep.subr.mxu0 0.0
        %878 = vmatpush1.msra.mxu0 0.0
        %879 = vmatprep.subr.mxu0 0.0
        %880 = vmatpush1.msra.mxu0 0.0
        %881 = vmatprep.subr.mxu0 0.0
        %882 = vmatpush1.msra.mxu0 0.0
        %883 = vmatprep.subr.mxu0 0.0
        %884 = vmatpush1.msra.mxu0 0.0
        %885 = vmatprep.subr.mxu0 0.0
        %886 = vmatpush1.msra.mxu0 0.0
        %887 = vmatprep.subr.mxu0 0.0
        %888 = vmatpush1.msra.mxu0 0.0
        %889 = vmatprep.subr.mxu0 0.0
        %890 = vmatpush1.msra.mxu0 0.0
        %891 = vmatprep.subr.mxu0 0.0
        %892 = vmatpush1.msra.mxu0 0.0
        %893 = vmatprep.subr.mxu0 0.0
        %894 = vmatpush1.msra.mxu0 0.0
        %895 = vmatprep.subr.mxu0 0.0
        %896 = vmatpush1.msra.mxu0 0.0
        %897 = vmatprep.subr.mxu0 0.0
        %898 = vmatpush1.msra.mxu0 0.0
        %899 = vmatprep.subr.mxu0 0.0
        %900 = vmatpush1.msra.mxu0 0.0
        %901 = vmatprep.subr.mxu0 0.0
        %902 = vmatpush1.msra.mxu0 0.0
        %903 = vmatprep.subr.mxu0 0.0
        %904 = vmatpush1.msra.mxu0 0.0
        %905 = vmatprep.subr.mxu0 0.0
        %906 = vmatpush1.msra.mxu0 0.0
        %907 = vmatprep.subr.mxu0 0.0
        %908 = vmatpush1.msra.mxu0 0.0
        %909 = vmatprep.subr.mxu0 0.0
        %910 = vmatpush1.msra.mxu0 0.0
        %911 = vmatprep.subr.mxu0 0.0
        %912 = vmatpush1.msra.mxu0 0.0
        %913 = vmatprep.subr.mxu0 0.0
        %914 = vmatpush1.msra.mxu0 0.0
        %915 = vmatprep.mubr.f32.mxu0 0.0
        %916 = vmatmul.mubr.f32.gmra.mrb[0].mxu0 %v849
        %v917 = vpop.f32.mrb[0].mxu0
        %v918 = vadd.f32 0.0, %v917
        %v919 = vpop.f32.mrb[0].mxu0
        %920 = vdwg.mxu0
        %921 = vrot.lane.b32.xlu0 %v362, 64
        %v922 = vpop.permute.xlu0 %921
        %v925 = vsel %vm491, %v842, 0
        %927 = vmatprep.subr.mxu0 0.0
        %928 = vmatpush1.msra.mxu0 %v922
        %929 = vmatprep.subr.mxu0 0.0
        %930 = vmatpush1.msra.mxu0 0.0
        %931 = vmatprep.subr.mxu0 0.0
        %932 = vmatpush1.msra.mxu0 0.0
        %933 = vmatprep.subr.mxu0 0.0
        %934 = vmatpush1.msra.mxu0 0.0
        %935 = vmatprep.subr.mxu0 0.0
        %936 = vmatpush1.msra.mxu0 0.0
        %937 = vmatprep.subr.mxu0 0.0
        %938 = vmatpush1.msra.mxu0 0.0
        %939 = vmatprep.subr.mxu0 0.0
        %940 = vmatpush1.msra.mxu0 0.0
        %941 = vmatprep.subr.mxu0 0.0
        %942 = vmatpush1.msra.mxu0 0.0
        %943 = vmatprep.subr.mxu0 0.0
        %944 = vmatpush1.msra.mxu0 0.0
        %945 = vmatprep.subr.mxu0 0.0
        %946 = vmatpush1.msra.mxu0 0.0
        %947 = vmatprep.subr.mxu0 0.0
        %948 = vmatpush1.msra.mxu0 0.0
        %949 = vmatprep.subr.mxu0 0.0
        %950 = vmatpush1.msra.mxu0 0.0
        %951 = vmatprep.subr.mxu0 0.0
        %952 = vmatpush1.msra.mxu0 0.0
        %953 = vmatprep.subr.mxu0 0.0
        %954 = vmatpush1.msra.mxu0 0.0
        %955 = vmatprep.subr.mxu0 0.0
        %956 = vmatpush1.msra.mxu0 0.0
        %957 = vmatprep.subr.mxu0 0.0
        %958 = vmatpush1.msra.mxu0 0.0
        %959 = vmatprep.subr.mxu0 0.0
        %960 = vmatpush1.msra.mxu0 0.0
        %961 = vmatprep.subr.mxu0 0.0
        %962 = vmatpush1.msra.mxu0 0.0
        %963 = vmatprep.subr.mxu0 0.0
        %964 = vmatpush1.msra.mxu0 0.0
        %965 = vmatprep.subr.mxu0 0.0
        %966 = vmatpush1.msra.mxu0 0.0
        %967 = vmatprep.subr.mxu0 0.0
        %968 = vmatpush1.msra.mxu0 0.0
        %969 = vmatprep.subr.mxu0 0.0
        %970 = vmatpush1.msra.mxu0 0.0
        %971 = vmatprep.subr.mxu0 0.0
        %972 = vmatpush1.msra.mxu0 0.0
        %973 = vmatprep.subr.mxu0 0.0
        %974 = vmatpush1.msra.mxu0 0.0
        %975 = vmatprep.subr.mxu0 0.0
        %976 = vmatpush1.msra.mxu0 0.0
        %977 = vmatprep.subr.mxu0 0.0
        %978 = vmatpush1.msra.mxu0 0.0
        %979 = vmatprep.subr.mxu0 0.0
        %980 = vmatpush1.msra.mxu0 0.0
        %981 = vmatprep.subr.mxu0 0.0
        %982 = vmatpush1.msra.mxu0 0.0
        %983 = vmatprep.subr.mxu0 0.0
        %984 = vmatpush1.msra.mxu0 0.0
        %985 = vmatprep.subr.mxu0 0.0
        %986 = vmatpush1.msra.mxu0 0.0
        %987 = vmatprep.subr.mxu0 0.0
        %988 = vmatpush1.msra.mxu0 0.0
        %989 = vmatprep.subr.mxu0 0.0
        %990 = vmatpush1.msra.mxu0 0.0
        %991 = vmatprep.mubr.f32.mxu0 0.0
        %992 = vmatmul.mubr.f32.gmra.mrb[0].mxu0 %v925
        %v993 = vpop.f32.mrb[0].mxu0
        %v994 = vadd.f32 0.0, %v993
        %v995 = vpop.f32.mrb[0].mxu0
        %996 = vdwg.mxu0
        %997 = vrot.lane.b32.xlu0 %v365, 64
        %v998 = vpop.permute.xlu0 %997
        %v1001 = vsel %vm491, %v843, 0
        %1003 = vmatprep.subr.mxu0 0.0
        %1004 = vmatpush1.msra.mxu0 %v998
        %1005 = vmatprep.subr.mxu0 0.0
        %1006 = vmatpush1.msra.mxu0 0.0
        %1007 = vmatprep.subr.mxu0 0.0
        %1008 = vmatpush1.msra.mxu0 0.0
        %1009 = vmatprep.subr.mxu0 0.0
        %1010 = vmatpush1.msra.mxu0 0.0
        %1011 = vmatprep.subr.mxu0 0.0
        %1012 = vmatpush1.msra.mxu0 0.0
        %1013 = vmatprep.subr.mxu0 0.0
        %1014 = vmatpush1.msra.mxu0 0.0
        %1015 = vmatprep.subr.mxu0 0.0
        %1016 = vmatpush1.msra.mxu0 0.0
        %1017 = vmatprep.subr.mxu0 0.0
        %1018 = vmatpush1.msra.mxu0 0.0
        %1019 = vmatprep.subr.mxu0 0.0
        %1020 = vmatpush1.msra.mxu0 0.0
        %1021 = vmatprep.subr.mxu0 0.0
        %1022 = vmatpush1.msra.mxu0 0.0
        %1023 = vmatprep.subr.mxu0 0.0
        %1024 = vmatpush1.msra.mxu0 0.0
        %1025 = vmatprep.subr.mxu0 0.0
        %1026 = vmatpush1.msra.mxu0 0.0
        %1027 = vmatprep.subr.mxu0 0.0
        %1028 = vmatpush1.msra.mxu0 0.0
        %1029 = vmatprep.subr.mxu0 0.0
        %1030 = vmatpush1.msra.mxu0 0.0
        %1031 = vmatprep.subr.mxu0 0.0
        %1032 = vmatpush1.msra.mxu0 0.0
        %1033 = vmatprep.subr.mxu0 0.0
        %1034 = vmatpush1.msra.mxu0 0.0
        %1035 = vmatprep.subr.mxu0 0.0
        %1036 = vmatpush1.msra.mxu0 0.0
        %1037 = vmatprep.subr.mxu0 0.0
        %1038 = vmatpush1.msra.mxu0 0.0
        %1039 = vmatprep.subr.mxu0 0.0
        %1040 = vmatpush1.msra.mxu0 0.0
        %1041 = vmatprep.subr.mxu0 0.0
        %1042 = vmatpush1.msra.mxu0 0.0
        %1043 = vmatprep.subr.mxu0 0.0
        %1044 = vmatpush1.msra.mxu0 0.0
        %1045 = vmatprep.subr.mxu0 0.0
        %1046 = vmatpush1.msra.mxu0 0.0
        %1047 = vmatprep.subr.mxu0 0.0
        %1048 = vmatpush1.msra.mxu0 0.0
        %1049 = vmatprep.subr.mxu0 0.0
        %1050 = vmatpush1.msra.mxu0 0.0
        %1051 = vmatprep.subr.mxu0 0.0
        %1052 = vmatpush1.msra.mxu0 0.0
        %1053 = vmatprep.subr.mxu0 0.0
        %1054 = vmatpush1.msra.mxu0 0.0
        %1055 = vmatprep.subr.mxu0 0.0
        %1056 = vmatpush1.msra.mxu0 0.0
        %1057 = vmatprep.subr.mxu0 0.0
        %1058 = vmatpush1.msra.mxu0 0.0
        %1059 = vmatprep.subr.mxu0 0.0
        %1060 = vmatpush1.msra.mxu0 0.0
        %1061 = vmatprep.subr.mxu0 0.0
        %1062 = vmatpush1.msra.mxu0 0.0
        %1063 = vmatprep.subr.mxu0 0.0
        %1064 = vmatpush1.msra.mxu0 0.0
        %1065 = vmatprep.subr.mxu0 0.0
        %1066 = vmatpush1.msra.mxu0 0.0
        %1067 = vmatprep.mubr.f32.mxu0 0.0
        %1068 = vmatmul.mubr.f32.gmra.mrb[0].mxu0 %v1001
        %v1069 = vpop.f32.mrb[0].mxu0
        %v1070 = vadd.f32 0.0, %v1069
        %v1071 = vpop.f32.mrb[0].mxu0
        %1072 = vdwg.mxu0
        %1073 = vrot.lane.b32.xlu0 %v368, 64
        %v1074 = vpop.permute.xlu0 %1073
        %v1077 = vsel %vm491, %v844, 0
        %1079 = vmatprep.subr.mxu0 0.0
        %1080 = vmatpush1.msra.mxu0 %v1074
        %1081 = vmatprep.subr.mxu0 0.0
        %1082 = vmatpush1.msra.mxu0 0.0
        %1083 = vmatprep.subr.mxu0 0.0
        %1084 = vmatpush1.msra.mxu0 0.0
        %1085 = vmatprep.subr.mxu0 0.0
        %1086 = vmatpush1.msra.mxu0 0.0
        %1087 = vmatprep.subr.mxu0 0.0
        %1088 = vmatpush1.msra.mxu0 0.0
        %1089 = vmatprep.subr.mxu0 0.0
        %1090 = vmatpush1.msra.mxu0 0.0
        %1091 = vmatprep.subr.mxu0 0.0
        %1092 = vmatpush1.msra.mxu0 0.0
        %1093 = vmatprep.subr.mxu0 0.0
        %1094 = vmatpush1.msra.mxu0 0.0
        %1095 = vmatprep.subr.mxu0 0.0
        %1096 = vmatpush1.msra.mxu0 0.0
        %1097 = vmatprep.subr.mxu0 0.0
        %1098 = vmatpush1.msra.mxu0 0.0
        %1099 = vmatprep.subr.mxu0 0.0
        %1100 = vmatpush1.msra.mxu0 0.0
        %1101 = vmatprep.subr.mxu0 0.0
        %1102 = vmatpush1.msra.mxu0 0.0
        %1103 = vmatprep.subr.mxu0 0.0
        %1104 = vmatpush1.msra.mxu0 0.0
        %1105 = vmatprep.subr.mxu0 0.0
        %1106 = vmatpush1.msra.mxu0 0.0
        %1107 = vmatprep.subr.mxu0 0.0
        %1108 = vmatpush1.msra.mxu0 0.0
        %1109 = vmatprep.subr.mxu0 0.0
        %1110 = vmatpush1.msra.mxu0 0.0
        %1111 = vmatprep.subr.mxu0 0.0
        %1112 = vmatpush1.msra.mxu0 0.0
        %1113 = vmatprep.subr.mxu0 0.0
        %1114 = vmatpush1.msra.mxu0 0.0
        %1115 = vmatprep.subr.mxu0 0.0
        %1116 = vmatpush1.msra.mxu0 0.0
        %1117 = vmatprep.subr.mxu0 0.0
        %1118 = vmatpush1.msra.mxu0 0.0
        %1119 = vmatprep.subr.mxu0 0.0
        %1120 = vmatpush1.msra.mxu0 0.0
        %1121 = vmatprep.subr.mxu0 0.0
        %1122 = vmatpush1.msra.mxu0 0.0
        %1123 = vmatprep.subr.mxu0 0.0
        %1124 = vmatpush1.msra.mxu0 0.0
        %1125 = vmatprep.subr.mxu0 0.0
        %1126 = vmatpush1.msra.mxu0 0.0
        %1127 = vmatprep.subr.mxu0 0.0
        %1128 = vmatpush1.msra.mxu0 0.0
        %1129 = vmatprep.subr.mxu0 0.0
        %1130 = vmatpush1.msra.mxu0 0.0
        %1131 = vmatprep.subr.mxu0 0.0
        %1132 = vmatpush1.msra.mxu0 0.0
        %1133 = vmatprep.subr.mxu0 0.0
        %1134 = vmatpush1.msra.mxu0 0.0
        %1135 = vmatprep.subr.mxu0 0.0
        %1136 = vmatpush1.msra.mxu0 0.0
        %1137 = vmatprep.subr.mxu0 0.0
        %1138 = vmatpush1.msra.mxu0 0.0
        %1139 = vmatprep.subr.mxu0 0.0
        %1140 = vmatpush1.msra.mxu0 0.0
        %1141 = vmatprep.subr.mxu0 0.0
        %1142 = vmatpush1.msra.mxu0 0.0
        %1143 = vmatprep.mubr.f32.mxu0 0.0
        %1144 = vmatmul.mubr.f32.gmra.mrb[0].mxu0 %v1077
        %v1145 = vpop.f32.mrb[0].mxu0
        %v1146 = vadd.f32 0.0, %v1145
        %v1147 = vpop.f32.mrb[0].mxu0
        %1148 = vdwg.mxu0
        %1150 = vrot.lane.b32.xlu0 %v994, 8
        %v1151 = vpop.permute.xlu0 %1150
        %1154 = vrot.lane.b32.xlu0 %v1070, 16
        %v1155 = vpop.permute.xlu0 %1154
        %1158 = vrot.lane.b32.xlu0 %v1146, 24
        %v1159 = vpop.permute.xlu0 %1158
        %v1161 = vsel %vm491, %v918, %v1151
        %vm1162 = vcmask 130048
        %v1163 = vsel %vm1162, %v1161, %v1155
        %vm1164 = vcmask 195584
        %v1165 = vsel %vm1164, %v1163, %v1159
        %1166 = vst.msk [vmem:[%s277] sm:$0xff] %vm286, %v1165
        %s1167 = sand.u32 %s146, 1
        %s1168 = scalar_lea.sflag [#allocation4], %s1167
        %s1169 = sand.u32 %s146, 1
        %s1170 = smul.addr %s1169, 8
        %s1171 = scalar_lea.vmem [#allocation8], %s1170
        // Predicated region
        $region53: #{tpu_custom_call.1} parent=39 // pred_check
          %p1172 = pneg %p156
        $region54: #{tpu_custom_call.1} parent=39 // pred_check_branch
          %1174 = sbr.rel (%p1172) target = $region56
        $region55: #{tpu_custom_call.1} parent=39 // pred_region
          %s1176 = ssub.s32 128, 128
          %1177 = vsyncadd %s1168, %s1176
          %s1178 = smul.addr %s23, 128
          %s1179 = scalar_lea.hbm %s5, %s1178
          %s1181 = sshll.u32 %s1171, 4
          %s1182 = int_to_ptr.vmem [resolvable:$true] %s1181
          %1184 = dma.vmem_to_hbm [thread:$0]  %s1182, 128, %s1179, %s1168
        $region56: #{tpu_custom_call.1} parent=39 // pred_fallthru
          _
      $region40: #{tpu_custom_call.1} parent=5 // pred_fallthru
        _
      %p1185 = scmp.le.s32.totalorder 2, %s18
      // Predicated region
      $region57: #{tpu_custom_call.1} parent=5 // pred_check
        %p1186 = pneg %p1185
      $region58: #{tpu_custom_call.1} parent=5 // pred_check_branch
        %1188 = sbr.rel (%p1186) target = $region60
      $region59: #{tpu_custom_call.1} parent=5 // pred_region
        %s1189 = ssub.s32 %s18, 2
        // Predicated region
        $region61: #{tpu_custom_call.1} parent=59 // pred_check
          %p1190 = pneg %p162
        $region62: #{tpu_custom_call.1} parent=59 // pred_check_branch
          %1192 = sbr.rel (%p1190) target = $region64
        $region63: #{tpu_custom_call.1} parent=59 // pred_region
          %s1193 = sand.u32 %s147, 1
          %s1194 = scalar_lea.sflag [#allocation4], %s1193
          %s1195 = sand.u32 %s147, 1
          %s1196 = smul.addr %s1195, 8
          %s1197 = scalar_lea.vmem [#allocation8], %s1196
          %1198 = dma.done %s1194, 128
        $region64: #{tpu_custom_call.1} parent=59 // pred_fallthru
          _
      $region60: #{tpu_custom_call.1} parent=5 // pred_fallthru
        _
    $region6: #{tpu_custom_call.1} parent=1 // loop_footer
      %s22 = sadd.s32 1, %s18
    $region7: #{tpu_custom_call.1} parent=1 // loop_footer_branch
      %17 = sbr.rel target = $region3
    $region8: #{tpu_custom_call.1} parent=1 // loop_exit
      _
    %1199 = vsyncpa [#allocation3], 1
    %s1200 = scalar_lea.sflag [#allocation3], 1
    %1201 = vsyncpa %s1200, 1
    %1202 = vsyncpa [#allocation6], 1
    %1203 = vsyncpa [#allocation4], 1
    %s1204 = scalar_lea.sflag [#allocation4], 1
    %1205 = vsyncpa %s1204, 1

</llo_original>
